<compile_context>
chip_gen: v5e
topology: v5e:2x2
jax: 0.10.0
libtpu: 0.0.40
codegen_flags: <defaults>
</compile_context>

<pallas_src>
import functools

import jax
import jax.numpy as jnp
from jax.experimental import pallas as pl
from jax.experimental.pallas import tpu as pltpu

_LANE = 128       # lane width: hidden feature dims padded to a multiple of this
_SUBLANE = 8      # sublane granularity for the batch (M) axis
_MAX_TILE_M = 512


def _round_up(n, m):
    return ((n + m - 1) // m) * m


def _vmem_capacity_bytes():
    try:
        return int(pltpu.get_tpu_info().vmem_capacity_bytes)
    except Exception:
        return 64 * 1024 * 1024   # conservative: v7x per-core VMEM


# ----------------------------------------------------------------------------
# Kernel: fused [x @ W0 + b0, ReLU] x n_layers, then x @ W_last + b_last.
# refs = (x_ref, W0, b0, W1, b1, ..., W_last, b_last, out_ref)
# MXU operands are `compute_dtype` (bf16 fast path or f32 exact path);
# accumulation, bias add and ReLU are always f32.
# ----------------------------------------------------------------------------
def _mlp_kernel(n_linear, compute_dtype, *refs):
    x_ref = refs[0]
    out_ref = refs[-1]
    param_refs = refs[1:-1]

    h = x_ref[...].astype(compute_dtype)
    for li in range(n_linear):
        w = param_refs[2 * li][...].astype(compute_dtype)
        b = param_refs[2 * li + 1][...]                      # (1, fo), f32
        acc = jnp.dot(h, w, preferred_element_type=jnp.float32)
        acc = acc + b.astype(jnp.float32)
        if li < n_linear - 1:
            acc = jnp.maximum(acc, 0.0)                      # ReLU (hidden only)
            h = acc.astype(compute_dtype)
        else:
            out_ref[...] = acc.astype(out_ref.dtype)


# ----------------------------------------------------------------------------
# Parameter preparation. Hidden dims are zero-padded to 128 multiples (exact:
# padded rows/cols are zero, padded biases are zero, ReLU keeps them zero).
# First-layer K (= input_dim) and last-layer N (= output_dim) stay UNPADDED so
# x / out HBM traffic is not inflated. bf16 is the default MXU operand dtype.
# ----------------------------------------------------------------------------
def prepare_params(params, param_dtype=jnp.bfloat16):
    n = len(params)
    prepped = []
    for li, (w, b) in enumerate(params):
        fi, fo = w.shape
        fi_p = fi if li == 0 else _round_up(fi, _LANE)
        fo_p = fo if li == n - 1 else _round_up(fo, _LANE)
        w_p = jnp.zeros((fi_p, fo_p), param_dtype).at[:fi, :fo].set(
            w.astype(param_dtype))
        b_p = jnp.zeros((1, fo_p), jnp.float32).at[0, :fo].set(
            b.astype(jnp.float32))
        prepped.append((w_p, b_p))
    return prepped


# ----------------------------------------------------------------------------
# Divisor-aware M-tile choice: minimize grid steps, then row padding, and keep
# >= 2 steps when batch >= 16 (v7x megacore). Returns (tile_m, padded_batch).
# ----------------------------------------------------------------------------
def _choose_tile_m(batch, max_tile):
    batch_p8 = _round_up(batch, _SUBLANE)
    max_tile = max(_SUBLANE, (min(max_tile, batch_p8) // _SUBLANE) * _SUBLANE)
    if batch_p8 <= _SUBLANE:
        return batch_p8, batch_p8
    best = None
    for t in range(_SUBLANE, max_tile + 1, _SUBLANE):
        bp = _round_up(batch_p8, t)
        steps = bp // t
        if steps < 2:
            continue
        key = (steps, bp - batch, -t)
        if best is None or key < best[0]:
            best = (key, t, bp)
    if best is None:
        return batch_p8, batch_p8
    return best[1], best[2]


# ----------------------------------------------------------------------------
# Wrapper
# ----------------------------------------------------------------------------
def diffusion_model_2d_forward(x, padded_params, output_dim, *, tile_m=None):
    """x: (batch, input_dim). padded_params: from prepare_params()."""
    batch, in_dim = x.shape
    n_linear = len(padded_params)
    compute_dtype = padded_params[0][0].dtype
    assert padded_params[-1][0].shape[1] == output_dim
    hid_p = max((w.shape[1] for w, _ in padded_params[:-1]), default=in_dim)

    x_item = jnp.dtype(x.dtype).itemsize
    param_bytes = sum(int(w.size) * w.dtype.itemsize + int(b.size) * b.dtype.itemsize
                      for w, b in padded_params)
    vmem_cap = _vmem_capacity_bytes()

    if tile_m is None:
        # VMEM-budget-aware cap on the M tile (x buffers + out buffers + f32
        # activation working set per row), then divisor-aware choice.
        per_row = (3 * in_dim * x_item + 2 * output_dim * x_item + 3 * hid_p * 4)
        budget = vmem_cap // 2 - param_bytes
        if budget <= 0:
            cap = _MAX_TILE_M
        else:
            cap = max(_SUBLANE,
                      min(_MAX_TILE_M, (budget // max(per_row, 1) // _SUBLANE) * _SUBLANE))
        tile_m, batch_p = _choose_tile_m(batch, cap)
    else:
        tile_m = _round_up(tile_m, _SUBLANE)
        batch_p = _round_up(batch, tile_m)

    # Row-pad x only when batch is not a tile multiple (chooser usually avoids it).
    if batch_p != batch:
        x_p = jnp.zeros((batch_p, in_dim), x.dtype).at[:batch].set(x)
    else:
        x_p = x

    grid = (batch_p // tile_m,)
    n_steps = grid[0]

    # Deeper pipelining on the streamed x tile when per-step compute is tiny.
    x_bufs = 3 if (hid_p <= 256 and n_steps >= 3) else 2
    x_spec = pl.BlockSpec((tile_m, in_dim), lambda i: (i, 0),
                          pipeline_mode=pl.Buffered(x_bufs))

    flat_inputs = [x_p]
    in_specs = [x_spec]
    for (w_p, b_p) in padded_params:
        flat_inputs.append(w_p)
        in_specs.append(pl.BlockSpec(w_p.shape, lambda i: (0, 0),
                                     pipeline_mode=pl.Buffered(1)))
        flat_inputs.append(b_p)
        in_specs.append(pl.BlockSpec(b_p.shape, lambda i: (0, 0),
                                     pipeline_mode=pl.Buffered(1)))

    out_spec = pl.BlockSpec((tile_m, output_dim), lambda i: (i, 0))

    # Generation-aware VMEM budget: actual need * 1.5 + slack, capped at 75% of
    # physical per-core VMEM (v7x: 64 MiB; v5e/v6e: 128 MiB).
    x_tile_bytes = tile_m * in_dim * x_item
    out_tile_bytes = tile_m * output_dim * x_item
    act_bytes = 3 * tile_m * hid_p * 4
    need = x_bufs * x_tile_bytes + 2 * out_tile_bytes + param_bytes + act_bytes
    vmem_limit = min(max(need * 3 // 2 + (2 << 20), 8 << 20), vmem_cap * 3 // 4)

    kernel = functools.partial(_mlp_kernel, n_linear, compute_dtype)

    out = pl.pallas_call(
        kernel,
        out_shape=jax.ShapeDtypeStruct((batch_p, output_dim), x.dtype),
        grid_spec=pltpu.PrefetchScalarGridSpec(
            num_scalar_prefetch=0,
            grid=grid,
            in_specs=in_specs,
            out_specs=out_spec,
        ),
        compiler_params=pltpu.CompilerParams(
            dimension_semantics=("parallel",),
            vmem_limit_bytes=int(vmem_limit),
        ),
    )(*flat_inputs)

    if batch_p != batch:
        out = out[:batch]
    return out


# ----------------------------------------------------------------------------
# PyTorch-style init + pure-JAX reference
# ----------------------------------------------------------------------------
def init_params(key, input_dim, n_layers, hidden_dim, output_dim):
    """nn.Linear default init: U(-1/sqrt(fan_in), 1/sqrt(fan_in)); W stored (in, out)."""
    dims = [input_dim] + [hidden_dim] * n_layers + [output_dim]
    params = []
    for li in range(len(dims) - 1):
        fan_in, fan_out = dims[li], dims[li + 1]
        key, kw, kb = jax.random.split(key, 3)
        bound = 1.0 / (fan_in ** 0.5)
        w = jax.random.uniform(kw, (fan_in, fan_out), jnp.float32,
                               minval=-bound, maxval=bound)
        b = jax.random.uniform(kb, (fan_out,), jnp.float32,
                               minval=-bound, maxval=bound)
        params.append((w, b))
    return params


def reference_forward(x, params):
    n_linear = len(params)
    h = x
    for li, (w, b) in enumerate(params):
        h = h @ w + b
        if li < n_linear - 1:
            h = jnp.maximum(h, 0.0)
    return h


if __name__ == "__main__":
    # Module hyperparameters (small, consistent with the forward pass).
    input_dim, n_layers, hidden_dim, output_dim = 8, 2, 32, 4
    batch = 16

    key = jax.random.PRNGKey(0)
    key, kx = jax.random.split(key)
    x = jax.random.normal(kx, (batch, input_dim), jnp.float32)
    params = init_params(key, input_dim, n_layers, hidden_dim, output_dim)
    ref = reference_forward(x, params)

    # 1) Exact path: f32 MXU operands.
    pp_f32 = prepare_params(params, param_dtype=jnp.float32)
    out_f32 = diffusion_model_2d_forward(x, pp_f32, output_dim)
    out_f32 = jax.block_until_ready(out_f32)
    assert out_f32.shape == (batch, output_dim)
    assert jnp.allclose(out_f32, ref, atol=1e-5, rtol=1e-5), "f32 mismatch vs reference"

    # 2) Default fast path (v6e/v7x): bf16 MXU operands, f32 accumulation.
    pp_bf16 = prepare_params(params)   # bf16 by default
    out_bf16 = diffusion_model_2d_forward(x, pp_bf16, output_dim)
    out_bf16 = jax.block_until_ready(out_bf16)
    assert out_bf16.shape == (batch, output_dim)
    assert jnp.allclose(out_bf16, ref, atol=5e-2, rtol=5e-2), "bf16 mismatch vs reference"

    print("KERNEL_OK")
</pallas_src>

<mosaic_0001>
module attributes {stable_mosaic.version = 11 : i64} {
  func.func @_mlp_kernel(%arg0: i32, %arg1: memref<8x8xf32, #tpu.memory_space<vmem>>, %arg2: memref<8x128xf32, #tpu.memory_space<vmem>>, %arg3: memref<1x128xf32, #tpu.memory_space<vmem>>, %arg4: memref<128x128xf32, #tpu.memory_space<vmem>>, %arg5: memref<1x128xf32, #tpu.memory_space<vmem>>, %arg6: memref<128x4xf32, #tpu.memory_space<vmem>>, %arg7: memref<1x4xf32, #tpu.memory_space<vmem>>, %arg8: memref<8x4xf32, #tpu.memory_space<vmem>>) attributes {dimension_semantics = [#tpu.dimension_semantics<parallel>], iteration_bounds = array<i64: 2>, scalar_prefetch = 0 : i64, scratch_operands = 0 : i64, tpu.core_type = #tpu.core_type<tc>, window_params = [{pipeline_mode = #tpu.pipeline_mode<double_buffered>, transform_indices = @transform_0, window_bounds = array<i64: 8, 8>}, {pipeline_mode = #tpu.pipeline_mode<synchronous>, transform_indices = @transform_1, window_bounds = array<i64: 8, 128>}, {pipeline_mode = #tpu.pipeline_mode<synchronous>, transform_indices = @transform_2, window_bounds = array<i64: 1, 128>}, {pipeline_mode = #tpu.pipeline_mode<synchronous>, transform_indices = @transform_3, window_bounds = array<i64: 128, 128>}, {pipeline_mode = #tpu.pipeline_mode<synchronous>, transform_indices = @transform_4, window_bounds = array<i64: 1, 128>}, {pipeline_mode = #tpu.pipeline_mode<synchronous>, transform_indices = @transform_5, window_bounds = array<i64: 128, 4>}, {pipeline_mode = #tpu.pipeline_mode<synchronous>, transform_indices = @transform_6, window_bounds = array<i64: 1, 4>}, {transform_indices = @transform_7, window_bounds = array<i64: 8, 4>}]} {
    %c0 = arith.constant 0 : index
    %c0_0 = arith.constant 0 : index
    %0 = vector.load %arg1[%c0, %c0_0] : memref<8x8xf32, #tpu.memory_space<vmem>>, vector<8x8xf32>
    %c0_1 = arith.constant 0 : index
    %c0_2 = arith.constant 0 : index
    %1 = vector.load %arg2[%c0_1, %c0_2] : memref<8x128xf32, #tpu.memory_space<vmem>>, vector<8x128xf32>
    %c0_3 = arith.constant 0 : index
    %c0_4 = arith.constant 0 : index
    %2 = vector.load %arg3[%c0_3, %c0_4] : memref<1x128xf32, #tpu.memory_space<vmem>>, vector<1x128xf32>
    %cst = arith.constant dense<0.000000e+00> : vector<8x128xf32>
    %3 = tpu.matmul %0, %1, %cst {dimension_numbers = #tpu.dot_dimension_numbers<[1], [0], [0], [1], [0, 0, 1, 1], [], []>} : vector<8x8xf32>, vector<8x128xf32>, vector<8x128xf32> -> vector<8x128xf32>
    %4 = vector.broadcast %2 : vector<1x128xf32> to vector<8x128xf32>
    %5 = arith.addf %3, %4 : vector<8x128xf32>
    %cst_5 = arith.constant 0.000000e+00 : f32
    %6 = vector.broadcast %cst_5 : f32 to vector<8x128xf32>
    %7 = arith.maximumf %5, %6 : vector<8x128xf32>
    %c0_6 = arith.constant 0 : index
    %c0_7 = arith.constant 0 : index
    %8 = vector.load %arg4[%c0_6, %c0_7] : memref<128x128xf32, #tpu.memory_space<vmem>>, vector<128x128xf32>
    %c0_8 = arith.constant 0 : index
    %c0_9 = arith.constant 0 : index
    %9 = vector.load %arg5[%c0_8, %c0_9] : memref<1x128xf32, #tpu.memory_space<vmem>>, vector<1x128xf32>
    %cst_10 = arith.constant dense<0.000000e+00> : vector<8x128xf32>
    %10 = tpu.matmul %7, %8, %cst_10 {dimension_numbers = #tpu.dot_dimension_numbers<[1], [0], [0], [1], [0, 0, 1, 1], [], []>} : vector<8x128xf32>, vector<128x128xf32>, vector<8x128xf32> -> vector<8x128xf32>
    %11 = vector.broadcast %9 : vector<1x128xf32> to vector<8x128xf32>
    %12 = arith.addf %10, %11 : vector<8x128xf32>
    %cst_11 = arith.constant 0.000000e+00 : f32
    %13 = vector.broadcast %cst_11 : f32 to vector<8x128xf32>
    %14 = arith.maximumf %12, %13 : vector<8x128xf32>
    %c0_12 = arith.constant 0 : index
    %c0_13 = arith.constant 0 : index
    %15 = vector.load %arg6[%c0_12, %c0_13] : memref<128x4xf32, #tpu.memory_space<vmem>>, vector<128x4xf32>
    %c0_14 = arith.constant 0 : index
    %c0_15 = arith.constant 0 : index
    %16 = vector.load %arg7[%c0_14, %c0_15] : memref<1x4xf32, #tpu.memory_space<vmem>>, vector<1x4xf32>
    %cst_16 = arith.constant dense<0.000000e+00> : vector<8x4xf32>
    %17 = tpu.matmul %14, %15, %cst_16 {dimension_numbers = #tpu.dot_dimension_numbers<[1], [0], [0], [1], [0, 0, 1, 1], [], []>} : vector<8x128xf32>, vector<128x4xf32>, vector<8x4xf32> -> vector<8x4xf32>
    %18 = vector.broadcast %16 : vector<1x4xf32> to vector<8x4xf32>
    %19 = arith.addf %17, %18 : vector<8x4xf32>
    %c0_17 = arith.constant 0 : index
    %c0_18 = arith.constant 0 : index
    %20 = vector.load %arg8[%c0_17, %c0_18] : memref<8x4xf32, #tpu.memory_space<vmem>>, vector<8x4xf32>
    tpu.vector_store %arg8[%c0_17, %c0_18], %19 {strides = array<i32>} : memref<8x4xf32, #tpu.memory_space<vmem>>, vector<8x4xf32>,
    return
  }
  func.func @transform_0(%arg0: i32) -> (i32, i32) {
    %c0_i32 = arith.constant 0 : i32
    %c0_i32_0 = arith.constant 0 : i32
    return %arg0, %c0_i32 : i32, i32
  }
  func.func @transform_1(%arg0: i32) -> (i32, i32) {
    %c0_i32 = arith.constant 0 : i32
    %c0_i32_0 = arith.constant 0 : i32
    %c0_i32_1 = arith.constant 0 : i32
    return %c0_i32, %c0_i32_0 : i32, i32
  }
  func.func @transform_2(%arg0: i32) -> (i32, i32) {
    %c0_i32 = arith.constant 0 : i32
    %c0_i32_0 = arith.constant 0 : i32
    %c0_i32_1 = arith.constant 0 : i32
    return %c0_i32, %c0_i32_0 : i32, i32
  }
  func.func @transform_3(%arg0: i32) -> (i32, i32) {
    %c0_i32 = arith.constant 0 : i32
    %c0_i32_0 = arith.constant 0 : i32
    %c0_i32_1 = arith.constant 0 : i32
    return %c0_i32, %c0_i32_0 : i32, i32
  }
  func.func @transform_4(%arg0: i32) -> (i32, i32) {
    %c0_i32 = arith.constant 0 : i32
    %c0_i32_0 = arith.constant 0 : i32
    %c0_i32_1 = arith.constant 0 : i32
    return %c0_i32, %c0_i32_0 : i32, i32
  }
  func.func @transform_5(%arg0: i32) -> (i32, i32) {
    %c0_i32 = arith.constant 0 : i32
    %c0_i32_0 = arith.constant 0 : i32
    %c0_i32_1 = arith.constant 0 : i32
    return %c0_i32, %c0_i32_0 : i32, i32
  }
  func.func @transform_6(%arg0: i32) -> (i32, i32) {
    %c0_i32 = arith.constant 0 : i32
    %c0_i32_0 = arith.constant 0 : i32
    %c0_i32_1 = arith.constant 0 : i32
    return %c0_i32, %c0_i32_0 : i32, i32
  }
  func.func @transform_7(%arg0: i32) -> (i32, i32) {
    %c0_i32 = arith.constant 0 : i32
    %c0_i32_0 = arith.constant 0 : i32
    return %arg0, %c0_i32 : i32, i32
  }
}

</mosaic_0001>

<llo_original>
// kernel: tpu_custom_call.1
$region0: #{tpu_custom_call.1}
  #allocation0 [shape = 'u32[]', space=smem, size = 0x4, offset = 0x4, fixed_abs, tag = 'smem constant byte address 0x4 - core index']
  #allocation1 [shape = 'u32[72,128]{1,0:T(1,128)}', space=vmem, size = 0x9000, scoped, tag = 'internal scratch']
  %s0 = inlined_call_operand.vmem [shape: f32[16,8], index: 0, kind: input, shape index: {}]
  %s1 = inlined_call_operand.vmem [shape: f32[8,128], index: 1, kind: input, shape index: {}]
  %s2 = inlined_call_operand.vmem [shape: f32[1,128], index: 2, kind: input, shape index: {}]
  %s3 = inlined_call_operand.vmem [shape: f32[128,128], index: 3, kind: input, shape index: {}]
  %s4 = inlined_call_operand.vmem [shape: f32[1,128], index: 4, kind: input, shape index: {}]
  %s5 = inlined_call_operand.vmem [shape: f32[128,4], index: 5, kind: input, shape index: {}]
  %s6 = inlined_call_operand.vmem [shape: f32[1,4], index: 6, kind: input, shape index: {}]
  %s7 = inlined_call_operand.vmem [shape: f32[16,4], index: 7, kind: output, shape index: {}]
  %s8 = sld [smem:[#allocation0]]
  $region61: #{tpu_custom_call.1} parent=0
    _
  %s10 = ssub.s32 1, %s8
  %s11 = scalar_select 0, %s10, %s8
  loop: start=0, step=1, limit=4
  $region2: #{tpu_custom_call.1} parent=0 // loop_pre_header
    _
  $region3: #{tpu_custom_call.1} parent=0 // loop_header
    %s13 = sphi 0, %s17
    %p14 = scmp.ge.s32.totalorder %s13, 4
    %s23 = sphi 0, %s25
    %s26 = sphi 0, %s23
    %s27 = sphi 0, %s26
    %s43 = sphi 0, %s27
    %s47 = sphi 0, %s47
    %s49 = sphi 0, %s47
    %s50 = sphi 0, %s49
    %s64 = sphi 0, %s50
    %s68 = sphi 0, %s68
    %s70 = sphi 0, %s68
    %s71 = sphi 0, %s70
    %s85 = sphi 0, %s71
    %s89 = sphi 0, %s89
    %s91 = sphi 0, %s89
    %s92 = sphi 0, %s91
    %s106 = sphi 0, %s92
    %s110 = sphi 0, %s110
    %s112 = sphi 0, %s110
    %s113 = sphi 0, %s112
    %s127 = sphi 0, %s113
    %s131 = sphi 0, %s131
    %s133 = sphi 0, %s131
    %s134 = sphi 0, %s133
    %s148 = sphi 0, %s134
    %s152 = sphi 0, %s152
    %s154 = sphi 0, %s152
    %s155 = sphi 0, %s154
    %s169 = sphi 0, %s155
    %s175 = sphi 0, %s177
    %s178 = sphi 0, %s175
    %s179 = sphi 0, %s178
    %s195 = sphi 0, %s179
  $region4: #{tpu_custom_call.1} parent=0 // loop_header_branch
    %16 = sbr.rel (%p14) target = $region8
  $region5: #{tpu_custom_call.1} parent=0 // loop_body
    %s18 = ssub.s32 %s13, 1
    %s19 = ssub.s32 %s13, 2
    %s20 = sadd.s32 %s13, 1
    %s21 = ssub.s32 %s13, %s20
    %p22 = scmp.eq.s32.totalorder %s21, 0
    %s24 = sadd.s32 %s23, 1
    %s25 = scalar_select %p22, %s23, %s24
    %p28 = pneg %p22
    %p29 = scmp.eq.s32.totalorder %s13, 1
    %p30 = por %p28, %p29
    %p31 = scmp.ne.s32.totalorder %s23, %s26
    %p32 = scmp.eq.s32.totalorder %s13, 0
    %p33 = por %p31, %p32
    %p34 = scmp.ne.s32.totalorder %s23, %s26
    %p35 = scmp.eq.s32.totalorder %s18, 1
    %p36 = por %p34, %p35
    %p37 = scmp.ne.s32.totalorder %s26, %s27
    %p38 = scmp.eq.s32.totalorder %s18, 0
    %p39 = por %p37, %p38
    %p40 = scmp.ne.s32.totalorder %s26, %s27
    %p41 = scmp.eq.s32.totalorder %s19, 1
    %p42 = por %p40, %p41
    %p44 = scmp.ne.s32.totalorder %s27, %s43
    %p45 = scmp.eq.s32.totalorder %s19, 0
    %p46 = por %p44, %p45
    %s48 = sadd.s32 %s47, 1
    %p51 = scmp.eq.s32.totalorder %s13, 1
    %p52 = scmp.ne.s32.totalorder %s47, %s49
    %p53 = scmp.eq.s32.totalorder %s13, 0
    %p54 = por %p52, %p53
    %p55 = scmp.ne.s32.totalorder %s47, %s49
    %p56 = scmp.eq.s32.totalorder %s18, 1
    %p57 = por %p55, %p56
    %p58 = scmp.ne.s32.totalorder %s49, %s50
    %p59 = scmp.eq.s32.totalorder %s18, 0
    %p60 = por %p58, %p59
    %p61 = scmp.ne.s32.totalorder %s49, %s50
    %p62 = scmp.eq.s32.totalorder %s19, 1
    %p63 = por %p61, %p62
    %p65 = scmp.ne.s32.totalorder %s50, %s64
    %p66 = scmp.eq.s32.totalorder %s19, 0
    %p67 = por %p65, %p66
    %s69 = sadd.s32 %s68, 1
    %p72 = scmp.eq.s32.totalorder %s13, 1
    %p73 = scmp.ne.s32.totalorder %s68, %s70
    %p74 = scmp.eq.s32.totalorder %s13, 0
    %p75 = por %p73, %p74
    %p76 = scmp.ne.s32.totalorder %s68, %s70
    %p77 = scmp.eq.s32.totalorder %s18, 1
    %p78 = por %p76, %p77
    %p79 = scmp.ne.s32.totalorder %s70, %s71
    %p80 = scmp.eq.s32.totalorder %s18, 0
    %p81 = por %p79, %p80
    %p82 = scmp.ne.s32.totalorder %s70, %s71
    %p83 = scmp.eq.s32.totalorder %s19, 1
    %p84 = por %p82, %p83
    %p86 = scmp.ne.s32.totalorder %s71, %s85
    %p87 = scmp.eq.s32.totalorder %s19, 0
    %p88 = por %p86, %p87
    %s90 = sadd.s32 %s89, 1
    %p93 = scmp.eq.s32.totalorder %s13, 1
    %p94 = scmp.ne.s32.totalorder %s89, %s91
    %p95 = scmp.eq.s32.totalorder %s13, 0
    %p96 = por %p94, %p95
    %p97 = scmp.ne.s32.totalorder %s89, %s91
    %p98 = scmp.eq.s32.totalorder %s18, 1
    %p99 = por %p97, %p98
    %p100 = scmp.ne.s32.totalorder %s91, %s92
    %p101 = scmp.eq.s32.totalorder %s18, 0
    %p102 = por %p100, %p101
    %p103 = scmp.ne.s32.totalorder %s91, %s92
    %p104 = scmp.eq.s32.totalorder %s19, 1
    %p105 = por %p103, %p104
    %p107 = scmp.ne.s32.totalorder %s92, %s106
    %p108 = scmp.eq.s32.totalorder %s19, 0
    %p109 = por %p107, %p108
    %s111 = sadd.s32 %s110, 1
    %p114 = scmp.eq.s32.totalorder %s13, 1
    %p115 = scmp.ne.s32.totalorder %s110, %s112
    %p116 = scmp.eq.s32.totalorder %s13, 0
    %p117 = por %p115, %p116
    %p118 = scmp.ne.s32.totalorder %s110, %s112
    %p119 = scmp.eq.s32.totalorder %s18, 1
    %p120 = por %p118, %p119
    %p121 = scmp.ne.s32.totalorder %s112, %s113
    %p122 = scmp.eq.s32.totalorder %s18, 0
    %p123 = por %p121, %p122
    %p124 = scmp.ne.s32.totalorder %s112, %s113
    %p125 = scmp.eq.s32.totalorder %s19, 1
    %p126 = por %p124, %p125
    %p128 = scmp.ne.s32.totalorder %s113, %s127
    %p129 = scmp.eq.s32.totalorder %s19, 0
    %p130 = por %p128, %p129
    %s132 = sadd.s32 %s131, 1
    %p135 = scmp.eq.s32.totalorder %s13, 1
    %p136 = scmp.ne.s32.totalorder %s131, %s133
    %p137 = scmp.eq.s32.totalorder %s13, 0
    %p138 = por %p136, %p137
    %p139 = scmp.ne.s32.totalorder %s131, %s133
    %p140 = scmp.eq.s32.totalorder %s18, 1
    %p141 = por %p139, %p140
    %p142 = scmp.ne.s32.totalorder %s133, %s134
    %p143 = scmp.eq.s32.totalorder %s18, 0
    %p144 = por %p142, %p143
    %p145 = scmp.ne.s32.totalorder %s133, %s134
    %p146 = scmp.eq.s32.totalorder %s19, 1
    %p147 = por %p145, %p146
    %p149 = scmp.ne.s32.totalorder %s134, %s148
    %p150 = scmp.eq.s32.totalorder %s19, 0
    %p151 = por %p149, %p150
    %s153 = sadd.s32 %s152, 1
    %p156 = scmp.eq.s32.totalorder %s13, 1
    %p157 = scmp.ne.s32.totalorder %s152, %s154
    %p158 = scmp.eq.s32.totalorder %s13, 0
    %p159 = por %p157, %p158
    %p160 = scmp.ne.s32.totalorder %s152, %s154
    %p161 = scmp.eq.s32.totalorder %s18, 1
    %p162 = por %p160, %p161
    %p163 = scmp.ne.s32.totalorder %s154, %s155
    %p164 = scmp.eq.s32.totalorder %s18, 0
    %p165 = por %p163, %p164
    %p166 = scmp.ne.s32.totalorder %s154, %s155
    %p167 = scmp.eq.s32.totalorder %s19, 1
    %p168 = por %p166, %p167
    %p170 = scmp.ne.s32.totalorder %s155, %s169
    %p171 = scmp.eq.s32.totalorder %s19, 0
    %p172 = por %p170, %p171
    %s173 = ssub.s32 %s13, %s20
    %p174 = scmp.eq.s32.totalorder %s173, 0
    %s176 = sadd.s32 %s175, 1
    %s177 = scalar_select %p174, %s175, %s176
    %p180 = pneg %p174
    %p181 = scmp.eq.s32.totalorder %s13, 1
    %p182 = por %p180, %p181
    %p183 = scmp.ne.s32.totalorder %s175, %s178
    %p184 = scmp.eq.s32.totalorder %s13, 0
    %p185 = por %p183, %p184
    %p186 = scmp.ne.s32.totalorder %s175, %s178
    %p187 = scmp.eq.s32.totalorder %s18, 1
    %p188 = por %p186, %p187
    %p189 = scmp.ne.s32.totalorder %s178, %s179
    %p190 = scmp.eq.s32.totalorder %s18, 0
    %p191 = por %p189, %p190
    %p192 = scmp.ne.s32.totalorder %s178, %s179
    %p193 = scmp.eq.s32.totalorder %s19, 1
    %p194 = por %p192, %p193
    %p196 = scmp.ne.s32.totalorder %s179, %s195
    %p197 = scmp.eq.s32.totalorder %s19, 0
    %p198 = por %p196, %p197
    %p199 = scmp.le.s32.totalorder 1, %s13
    %p200 = scmp.lt.s32.totalorder %s13, 3
    %p201 = pnand %p199, %p200
    %p202 = pneg %p201
    // Predicated region
    $region9: #{tpu_custom_call.1} parent=5 // pred_check
      _
    $region10: #{tpu_custom_call.1} parent=5 // pred_check_branch
      %204 = sbr.rel (%p201) target = $region12
    $region11: #{tpu_custom_call.1} parent=5 // pred_region
      %s205 = ssub.s32 %s13, 1
      // Predicated region
      $region13: #{tpu_custom_call.1} parent=11 // pred_check
        %p206 = pneg %p60
      $region14: #{tpu_custom_call.1} parent=11 // pred_check_branch
        %208 = sbr.rel (%p206) target = $region16
      $region15: #{tpu_custom_call.1} parent=11 // pred_region
        _
      $region16: #{tpu_custom_call.1} parent=11 // pred_fallthru
        _
      // Predicated region
      $region17: #{tpu_custom_call.1} parent=11 // pred_check
        %p209 = pneg %p81
      $region18: #{tpu_custom_call.1} parent=11 // pred_check_branch
        %211 = sbr.rel (%p209) target = $region20
      $region19: #{tpu_custom_call.1} parent=11 // pred_region
        _
      $region20: #{tpu_custom_call.1} parent=11 // pred_fallthru
        _
      // Predicated region
      $region21: #{tpu_custom_call.1} parent=11 // pred_check
        %p212 = pneg %p102
      $region22: #{tpu_custom_call.1} parent=11 // pred_check_branch
        %214 = sbr.rel (%p212) target = $region24
      $region23: #{tpu_custom_call.1} parent=11 // pred_region
        _
      $region24: #{tpu_custom_call.1} parent=11 // pred_fallthru
        _
      // Predicated region
      $region25: #{tpu_custom_call.1} parent=11 // pred_check
        %p215 = pneg %p123
      $region26: #{tpu_custom_call.1} parent=11 // pred_check_branch
        %217 = sbr.rel (%p215) target = $region28
      $region27: #{tpu_custom_call.1} parent=11 // pred_region
        _
      $region28: #{tpu_custom_call.1} parent=11 // pred_fallthru
        _
      // Predicated region
      $region29: #{tpu_custom_call.1} parent=11 // pred_check
        %p218 = pneg %p144
      $region30: #{tpu_custom_call.1} parent=11 // pred_check_branch
        %220 = sbr.rel (%p218) target = $region32
      $region31: #{tpu_custom_call.1} parent=11 // pred_region
        _
      $region32: #{tpu_custom_call.1} parent=11 // pred_fallthru
        _
      // Predicated region
      $region33: #{tpu_custom_call.1} parent=11 // pred_check
        %p221 = pneg %p165
      $region34: #{tpu_custom_call.1} parent=11 // pred_check_branch
        %223 = sbr.rel (%p221) target = $region36
      $region35: #{tpu_custom_call.1} parent=11 // pred_region
        _
      $region36: #{tpu_custom_call.1} parent=11 // pred_fallthru
        _
    $region12: #{tpu_custom_call.1} parent=5 // pred_fallthru
      _
    %p224 = scmp.lt.s32.totalorder %s13, 2
    // Predicated region
    $region37: #{tpu_custom_call.1} parent=5 // pred_check
      %p225 = pneg %p224
    $region38: #{tpu_custom_call.1} parent=5 // pred_check_branch
      %227 = sbr.rel (%p225) target = $region40
    $region39: #{tpu_custom_call.1} parent=5 // pred_region
      // Predicated region
      $region41: #{tpu_custom_call.1} parent=39 // pred_check
        %p228 = pneg %p33
      $region42: #{tpu_custom_call.1} parent=39 // pred_check_branch
        %230 = sbr.rel (%p228) target = $region44
      $region43: #{tpu_custom_call.1} parent=39 // pred_region
        %p231 = scmp.lt.s32.totalorder %s13, 1
        %s232 = scalar_select %p231, %s13, 1
        %s233 = smul.addr %s232, 8
        %s234 = scalar_lea.vmem %s0, %s233
      $region44: #{tpu_custom_call.1} parent=39 // pred_fallthru
        _
    $region40: #{tpu_custom_call.1} parent=5 // pred_fallthru
      _
    %p235 = scmp.le.s32.totalorder 1, %s13
    %p236 = scmp.lt.s32.totalorder %s13, 3
    %p237 = pnand %p235, %p236
    %p238 = pneg %p237
    // Predicated region
    $region45: #{tpu_custom_call.1} parent=5 // pred_check
      _
    $region46: #{tpu_custom_call.1} parent=5 // pred_check_branch
      %240 = sbr.rel (%p237) target = $region48
    $region47: #{tpu_custom_call.1} parent=5 // pred_region
      %s241 = ssub.s32 %s13, 1
      %p242 = scmp.lt.s32.totalorder %s18, 1
      %s243 = scalar_select %p242, %s18, 1
      %s244 = smul.addr %s243, 8
      %s245 = scalar_lea.vmem %s0, %s244
      %p246 = pneg %p39
      %p247 = pneg %p36
      %p248 = pneg %p60
      %p249 = pneg %p57
      %p250 = pneg %p81
      %p251 = pneg %p78
      %p252 = pneg %p102
      %p253 = pneg %p99
      %p254 = pneg %p123
      %p255 = pneg %p120
      %p256 = pneg %p144
      %p257 = pneg %p141
      %p258 = pneg %p165
      %p259 = pneg %p162
      %p260 = pneg %p191
      %p261 = pneg %p188
      %p262 = scmp.lt.s32.totalorder %s18, 1
      %s263 = scalar_select %p262, %s18, 1
      %s264 = smul.addr %s263, 8
      %s265 = scalar_lea.vmem %s7, %s264
      %p266 = scmp.lt.s32.totalorder %s18, 1
      %s267 = scalar_select %p266, %s18, 1
      %s268 = smul.addr %s267, 8
      %s269 = scalar_lea.vmem %s0, %s268
      %p270 = scmp.lt.s32.totalorder %s18, 1
      %s271 = scalar_select %p270, %s18, 1
      %s272 = smul.addr %s271, 8
      %s273 = scalar_lea.vmem %s7, %s272
      %v274 = vld [vmem:[%s269] sm:$0xff]
      %v275 = vld [vmem:[%s1] sm:$0xff]
      %v276 = vld [vmem:[%s2] sm:$0x1]
      %v278 = vperm.slane %v276, 0
      %vm280 = vcmask 64512
      %v282 = vsel %vm280, %v274, 0
      %284 = vmatpush.msra.mxu0 0.0
      %285 = vmatpush.msra.mxu0 0.0
      %286 = vmatpush.msra.mxu0 0.0
      %287 = vmatpush.msra.mxu0 0.0
      %288 = vmatpush.msra.mxu0 0.0
      %289 = vmatpush.msra.mxu0 0.0
      %290 = vmatpush.msra.mxu0 0.0
      %291 = vmatpush.msra.mxu0 0.0
      %292 = vmatpush.msra.mxu0 0.0
      %293 = vmatpush.msra.mxu0 0.0
      %294 = vmatpush.msra.mxu0 0.0
      %295 = vmatpush.msra.mxu0 0.0
      %296 = vmatpush.msra.mxu0 0.0
      %297 = vmatpush.msra.mxu0 0.0
      %298 = vmatpush.msra.mxu0 0.0
      %299 = vmatpush.msra.mxu0 %v275
      %300 = vmatmul.f32.gmra.mxu0 %v282
      %v301 = vpop.f32.mrf.mxu0
      %v302 = vadd.f32 %v278, %v301
      %303 = vdwg.mxu0
      %v304 = vmax.f32 %v302, 0.0
      %v305 = vld [vmem:[%s3] sm:$0xff]
      %v306 = vld [vmem:[%s3 + $0x8] sm:$0xff]
      %v307 = vld [vmem:[%s3 + $0x10] sm:$0xff]
      %v308 = vld [vmem:[%s3 + $0x18] sm:$0xff]
      %v309 = vld [vmem:[%s3 + $0x20] sm:$0xff]
      %v310 = vld [vmem:[%s3 + $0x28] sm:$0xff]
      %v311 = vld [vmem:[%s3 + $0x30] sm:$0xff]
      %v312 = vld [vmem:[%s3 + $0x38] sm:$0xff]
      %v313 = vld [vmem:[%s3 + $0x40] sm:$0xff]
      %v314 = vld [vmem:[%s3 + $0x48] sm:$0xff]
      %v315 = vld [vmem:[%s3 + $0x50] sm:$0xff]
      %v316 = vld [vmem:[%s3 + $0x58] sm:$0xff]
      %v317 = vld [vmem:[%s3 + $0x60] sm:$0xff]
      %v318 = vld [vmem:[%s3 + $0x68] sm:$0xff]
      %v319 = vld [vmem:[%s3 + $0x70] sm:$0xff]
      %v320 = vld [vmem:[%s3 + $0x78] sm:$0xff]
      %v321 = vld [vmem:[%s4] sm:$0x1]
      %v323 = vperm.slane %v321, 0
      %325 = vmatpush.msra.mxu0 %v320
      %326 = vmatpush.msra.mxu0 %v319
      %327 = vmatpush.msra.mxu0 %v318
      %328 = vmatpush.msra.mxu0 %v317
      %329 = vmatpush.msra.mxu0 %v316
      %330 = vmatpush.msra.mxu0 %v315
      %331 = vmatpush.msra.mxu0 %v314
      %332 = vmatpush.msra.mxu0 %v313
      %333 = vmatpush.msra.mxu0 %v312
      %334 = vmatpush.msra.mxu0 %v311
      %335 = vmatpush.msra.mxu0 %v310
      %336 = vmatpush.msra.mxu0 %v309
      %337 = vmatpush.msra.mxu0 %v308
      %338 = vmatpush.msra.mxu0 %v307
      %339 = vmatpush.msra.mxu0 %v306
      %340 = vmatpush.msra.mxu0 %v305
      %341 = vmatmul.f32.gmra.mxu0 %v304
      %v342 = vpop.f32.mrf.mxu0
      %v343 = vadd.f32 %v323, %v342
      %344 = vdwg.mxu0
      %v345 = vmax.f32 %v343, 0.0
      %v346 = vld [vmem:[%s5] sm:$0xff]
      %v347 = vld [vmem:[%s5 + $0x8] sm:$0xff]
      %v348 = vld [vmem:[%s5 + $0x10] sm:$0xff]
      %v349 = vld [vmem:[%s5 + $0x18] sm:$0xff]
      %v350 = vld [vmem:[%s5 + $0x20] sm:$0xff]
      %v351 = vld [vmem:[%s5 + $0x28] sm:$0xff]
      %v352 = vld [vmem:[%s5 + $0x30] sm:$0xff]
      %v353 = vld [vmem:[%s5 + $0x38] sm:$0xff]
      %v354 = vld [vmem:[%s5 + $0x40] sm:$0xff]
      %v355 = vld [vmem:[%s5 + $0x48] sm:$0xff]
      %v356 = vld [vmem:[%s5 + $0x50] sm:$0xff]
      %v357 = vld [vmem:[%s5 + $0x58] sm:$0xff]
      %v358 = vld [vmem:[%s5 + $0x60] sm:$0xff]
      %v359 = vld [vmem:[%s5 + $0x68] sm:$0xff]
      %v360 = vld [vmem:[%s5 + $0x70] sm:$0xff]
      %v361 = vld [vmem:[%s5 + $0x78] sm:$0xff]
      %v362 = vld [vmem:[%s6] sm:$0x1]
      %v364 = vperm.slane %v362, 0
      %366 = vmatpush.msra.mxu0 %v361
      %367 = vmatpush.msra.mxu0 %v360
      %368 = vmatpush.msra.mxu0 %v359
      %369 = vmatpush.msra.mxu0 %v358
      %370 = vmatpush.msra.mxu0 %v357
      %371 = vmatpush.msra.mxu0 %v356
      %372 = vmatpush.msra.mxu0 %v355
      %373 = vmatpush.msra.mxu0 %v354
      %374 = vmatpush.msra.mxu0 %v353
      %375 = vmatpush.msra.mxu0 %v352
      %376 = vmatpush.msra.mxu0 %v351
      %377 = vmatpush.msra.mxu0 %v350
      %378 = vmatpush.msra.mxu0 %v349
      %379 = vmatpush.msra.mxu0 %v348
      %380 = vmatpush.msra.mxu0 %v347
      %381 = vmatpush.msra.mxu0 %v346
      %382 = vmatmul.f32.gmra.mxu0 %v345
      %v383 = vpop.f32.mrf.mxu0
      %v384 = vadd.f32 %v364, %v383
      %385 = vdwg.mxu0
      %vm386 = vcmask 31744
      %387 = vst.msk [vmem:[%s273] sm:$0xff] %vm386, %v384
      %p388 = scmp.lt.s32.totalorder %s18, 1
      %s389 = scalar_select %p388, %s18, 1
      %s390 = smul.addr %s389, 8
      %s391 = scalar_lea.vmem %s7, %s390
      // Predicated region
      $region49: #{tpu_custom_call.1} parent=47 // pred_check
        %p392 = pneg %p188
      $region50: #{tpu_custom_call.1} parent=47 // pred_check_branch
        %394 = sbr.rel (%p392) target = $region52
      $region51: #{tpu_custom_call.1} parent=47 // pred_region
        _
      $region52: #{tpu_custom_call.1} parent=47 // pred_fallthru
        _
    $region48: #{tpu_custom_call.1} parent=5 // pred_fallthru
      _
    %p395 = scmp.le.s32.totalorder 2, %s13
    // Predicated region
    $region53: #{tpu_custom_call.1} parent=5 // pred_check
      %p396 = pneg %p395
    $region54: #{tpu_custom_call.1} parent=5 // pred_check_branch
      %398 = sbr.rel (%p396) target = $region56
    $region55: #{tpu_custom_call.1} parent=5 // pred_region
      %s399 = ssub.s32 %s13, 2
      // Predicated region
      $region57: #{tpu_custom_call.1} parent=55 // pred_check
        %p400 = pneg %p194
      $region58: #{tpu_custom_call.1} parent=55 // pred_check_branch
        %402 = sbr.rel (%p400) target = $region60
      $region59: #{tpu_custom_call.1} parent=55 // pred_region
        %p403 = scmp.lt.s32.totalorder %s19, 1
        %s404 = scalar_select %p403, %s19, 1
        %s405 = smul.addr %s404, 8
        %s406 = scalar_lea.vmem %s7, %s405
      $region60: #{tpu_custom_call.1} parent=55 // pred_fallthru
        _
    $region56: #{tpu_custom_call.1} parent=5 // pred_fallthru
      _
  $region6: #{tpu_custom_call.1} parent=0 // loop_footer
    %s17 = sadd.s32 1, %s13
  $region7: #{tpu_custom_call.1} parent=0 // loop_footer_branch
    %12 = sbr.rel target = $region3
  $region8: #{tpu_custom_call.1} parent=0 // loop_exit
    _

</llo_original>
